<compile_context>
chip_gen: v5e
topology: v5e:2x2
jax: 0.10.0
libtpu: 0.0.40
codegen_flags: <defaults>
</compile_context>

<pallas_src>
import jax
import jax.numpy as jnp
from jax import lax
from jax.experimental import pallas as pl
from jax.experimental.pallas import tpu as pltpu

EPS = 1e-5


def _choose_channel_block(c):
    """Channel block: multiple of 8 (sublane constraint) that divides C.

    Prefer >=2 blocks so the 'parallel' grid axis can use both TensorCores
    on v7x; fall back to the full channel dim (always legal)."""
    if c % 8 != 0:
        return c
    for cand in (128, 64, 32, 16, 8):
        if c % cand == 0 and c // cand >= 2:
            return cand
    return c


def _choose_spatial_tile(n, tc, hw, itemsize, target_bytes=2 * 1024 * 1024):
    """Spatial (lane) tile: full H*W if it fits a ~2 MiB tile, else the
    largest multiple of 128 within budget (keeps double-buffered in+out tiles
    far below the 64 MiB v7x VMEM)."""
    cols = max(target_bytes // max(n * tc * itemsize, 1), 128)
    if hw <= cols:
        return hw
    return (cols // 128) * 128


def _make_kernel(num_s_tiles, count, hw, ts, need_mask):
    inv_count = 1.0 / float(count)

    def kernel(x_ref, gamma_ref, beta_ref, o_ref,
               sum_ref, sumsq_ref, scale_ref, bias_ref):
        p = pl.program_id(1)   # 0 = stats pass, 1 = normalize pass
        s = pl.program_id(2)   # spatial tile

        @pl.when((p == 0) & (s == 0))
        def _init():
            sum_ref[...] = jnp.zeros_like(sum_ref)
            sumsq_ref[...] = jnp.zeros_like(sumsq_ref)

        @pl.when(p == 0)
        def _stats():
            x = x_ref[...].astype(jnp.float32)            # (N, TC, TS)
            if need_mask:
                col = lax.broadcasted_iota(jnp.int32, x.shape, 2)
                valid = (s * ts + col) < hw
                x = jnp.where(valid, x, 0.0)
            part = jnp.sum(x, axis=0)                     # (TC, TS)
            part2 = jnp.sum(x * x, axis=0)                # (TC, TS)
            sum_ref[...] += jnp.sum(part, axis=1, keepdims=True)
            sumsq_ref[...] += jnp.sum(part2, axis=1, keepdims=True)

            @pl.when(s == num_s_tiles - 1)
            def _finalize():
                mean = sum_ref[...] * inv_count                       # (TC, 1)
                var = jnp.maximum(
                    sumsq_ref[...] * inv_count - mean * mean, 0.0)
                inv_std = lax.rsqrt(var + EPS)
                scale = gamma_ref[...].astype(jnp.float32) * inv_std
                scale_ref[...] = scale
                bias_ref[...] = beta_ref[...].astype(jnp.float32) - mean * scale

        @pl.when(p == 1)
        def _normalize():
            x = x_ref[...].astype(jnp.float32)
            y = x * scale_ref[...][None, :, :] + bias_ref[...][None, :, :]
            o_ref[...] = y.astype(o_ref.dtype)

    return kernel


def switch_batch_norm_2d(x_nchw, gammas, betas, idx=0, *, spatial_tile=None):
    """Pallas implementation of SwitchBatchNorm2d.forward (training-mode norm).

    x_nchw: (N, C, H, W)
    gammas, betas: (2, C) — parameters of the two switched BatchNorm2d layers.
    idx: which BN branch to use (module default is 0). Works for python ints
         and traced scalars (plain indexing lowers to dynamic_slice).
    """
    n, c, h, w = x_nchw.shape
    hw = h * w
    x3 = x_nchw.reshape(n, c, hw)                     # free contiguous reshape

    gamma = gammas[idx].astype(jnp.float32).reshape(c, 1)
    beta = betas[idx].astype(jnp.float32).reshape(c, 1)

    itemsize = jnp.dtype(x_nchw.dtype).itemsize
    tc = _choose_channel_block(c)
    ts = spatial_tile if spatial_tile is not None else _choose_spatial_tile(
        n, tc, hw, itemsize)
    num_c = c // tc
    num_s = pl.cdiv(hw, ts)
    need_mask = (hw % ts) != 0
    count = n * hw

    kernel = _make_kernel(num_s, count, hw, ts, need_mask)

    out3 = pl.pallas_call(
        kernel,
        out_shape=jax.ShapeDtypeStruct((n, c, hw), x_nchw.dtype),
        grid_spec=pltpu.PrefetchScalarGridSpec(
            num_scalar_prefetch=0,
            # (channel blocks [parallel], phase [stats/normalize], spatial tiles)
            grid=(num_c, 2, num_s),
            in_specs=[
                pl.BlockSpec((n, tc, ts), lambda cb, p, s: (0, cb, s)),
                pl.BlockSpec((tc, 1), lambda cb, p, s: (cb, 0)),
                pl.BlockSpec((tc, 1), lambda cb, p, s: (cb, 0)),
            ],
            # Phase 0 parks the output index on (0, cb, 0) so no garbage
            # writebacks happen; phase 1 writes each tile exactly once.
            out_specs=pl.BlockSpec((n, tc, ts), lambda cb, p, s: (0, cb, s * p)),
            scratch_shapes=[
                pltpu.VMEM((tc, 1), jnp.float32),   # sum
                pltpu.VMEM((tc, 1), jnp.float32),   # sum of squares
                pltpu.VMEM((tc, 1), jnp.float32),   # folded scale
                pltpu.VMEM((tc, 1), jnp.float32),   # folded bias
            ],
        ),
        compiler_params=pltpu.CompilerParams(
            dimension_semantics=("parallel", "arbitrary", "arbitrary"),
            vmem_limit_bytes=48 * 1024 * 1024,
        ),
        cost_estimate=pl.CostEstimate(
            flops=int(5 * n * c * hw),
            transcendentals=int(c),
            bytes_accessed=int(3 * n * c * hw * itemsize),
        ),
    )(x3, gamma, beta)

    return out3.reshape(n, c, h, w)


def _reference(x_nchw, gammas, betas, idx=0):
    x = x_nchw.astype(jnp.float32)
    mean = jnp.mean(x, axis=(0, 2, 3), keepdims=True)
    var = jnp.mean((x - mean) ** 2, axis=(0, 2, 3), keepdims=True)
    g = gammas[idx].astype(jnp.float32).reshape(1, -1, 1, 1)
    b = betas[idx].astype(jnp.float32).reshape(1, -1, 1, 1)
    return ((x - mean) * lax.rsqrt(var + EPS) * g + b).astype(x_nchw.dtype)


if __name__ == "__main__":
    key = jax.random.PRNGKey(0)

    def make_params(c):
        gammas = jnp.stack([
            1.0 + 0.1 * jnp.arange(c, dtype=jnp.float32),
            1.0 - 0.05 * jnp.arange(c, dtype=jnp.float32),
        ])
        betas = jnp.stack([
            0.05 * jnp.arange(c, dtype=jnp.float32),
            -0.02 * jnp.arange(c, dtype=jnp.float32),
        ])
        return gammas, betas

    # 1) Basic small NCHW, single tile, branch 0.
    x1 = jax.random.normal(key, (2, 4, 16, 16), dtype=jnp.float32)
    g1, b1 = make_params(4)
    out1 = jax.block_until_ready(switch_batch_norm_2d(x1, g1, b1, idx=0))
    ref1 = _reference(x1, g1, b1, idx=0)
    assert out1.shape == x1.shape
    assert jnp.allclose(out1, ref1, atol=1e-4, rtol=1e-4)

    # 2) Multiple channel blocks + spatial tiling with a masked edge tile,
    #    switched to branch 1 (exercises the two-phase accumulation path).
    x2 = jax.random.normal(jax.random.fold_in(key, 1), (2, 16, 12, 12),
                           dtype=jnp.float32)
    g2, b2 = make_params(16)
    out2 = jax.block_until_ready(
        switch_batch_norm_2d(x2, g2, b2, idx=1, spatial_tile=128))
    ref2 = _reference(x2, g2, b2, idx=1)
    assert jnp.allclose(out2, ref2, atol=1e-4, rtol=1e-4)

    # 3) bf16 activations (f32 accumulation inside the kernel).
    x3 = jax.random.normal(jax.random.fold_in(key, 2), (2, 8, 16, 16),
                           dtype=jnp.bfloat16)
    g3, b3 = make_params(8)
    out3 = jax.block_until_ready(switch_batch_norm_2d(x3, g3, b3, idx=0))
    ref3 = _reference(x3, g3, b3, idx=0)
    assert out3.dtype == jnp.bfloat16
    assert jnp.allclose(out3.astype(jnp.float32), ref3.astype(jnp.float32),
                        atol=5e-2, rtol=5e-2)

    print("KERNEL_OK")
</pallas_src>

<mosaic_0001>
module attributes {stable_mosaic.version = 11 : i64} {
  func.func @kernel(%arg0: i32, %arg1: i32, %arg2: i32, %arg3: memref<2x4x256xf32, #tpu.memory_space<vmem>>, %arg4: memref<4x1xf32, #tpu.memory_space<vmem>>, %arg5: memref<4x1xf32, #tpu.memory_space<vmem>>, %arg6: memref<2x4x256xf32, #tpu.memory_space<vmem>>, %arg7: memref<4x1xf32, #tpu.memory_space<vmem>>, %arg8: memref<4x1xf32, #tpu.memory_space<vmem>>, %arg9: memref<4x1xf32, #tpu.memory_space<vmem>>, %arg10: memref<4x1xf32, #tpu.memory_space<vmem>>) attributes {dimension_semantics = [#tpu.dimension_semantics<parallel>, #tpu.dimension_semantics<arbitrary>, #tpu.dimension_semantics<arbitrary>], iteration_bounds = array<i64: 1, 2, 1>, scalar_prefetch = 0 : i64, scratch_operands = 4 : i64, tpu.core_type = #tpu.core_type<tc>, window_params = [{transform_indices = @transform_0, window_bounds = array<i64: 2, 4, 256>}, {transform_indices = @transform_1, window_bounds = array<i64: 4, 1>}, {transform_indices = @transform_2, window_bounds = array<i64: 4, 1>}, {transform_indices = @transform_3, window_bounds = array<i64: 2, 4, 256>}]} {
    %c0_i32 = arith.constant 0 : i32
    %0 = arith.cmpi eq, %arg1, %c0_i32 : i32
    %c0_i32_0 = arith.constant 0 : i32
    %1 = arith.cmpi eq, %arg2, %c0_i32_0 : i32
    %2 = arith.andi %0, %1 : i1
    %3 = arith.extui %2 : i1 to i32
    %c0_i32_1 = arith.constant 0 : i32
    %4 = arith.cmpi ne, %3, %c0_i32_1 : i32
    scf.if %4 {
      %cst = arith.constant 0.000000e+00 : f32
      %11 = vector.broadcast %cst : f32 to vector<4x1xf32>
      %c0 = arith.constant 0 : index
      %c0_5 = arith.constant 0 : index
      %12 = vector.load %arg7[%c0, %c0_5] : memref<4x1xf32, #tpu.memory_space<vmem>>, vector<4x1xf32>
      tpu.vector_store %arg7[%c0, %c0_5], %11 {strides = array<i32>} : memref<4x1xf32, #tpu.memory_space<vmem>>, vector<4x1xf32>,
      %cst_6 = arith.constant 0.000000e+00 : f32
      %13 = vector.broadcast %cst_6 : f32 to vector<4x1xf32>
      %c0_7 = arith.constant 0 : index
      %c0_8 = arith.constant 0 : index
      %14 = vector.load %arg8[%c0_7, %c0_8] : memref<4x1xf32, #tpu.memory_space<vmem>>, vector<4x1xf32>
      tpu.vector_store %arg8[%c0_7, %c0_8], %13 {strides = array<i32>} : memref<4x1xf32, #tpu.memory_space<vmem>>, vector<4x1xf32>,
    } else {
    }
    %c0_i32_2 = arith.constant 0 : i32
    %5 = arith.cmpi eq, %arg1, %c0_i32_2 : i32
    %6 = arith.extui %5 : i1 to i32
    %c0_i32_3 = arith.constant 0 : i32
    %7 = arith.cmpi ne, %6, %c0_i32_3 : i32
    scf.if %7 {
      %c0 = arith.constant 0 : index
      %c0_5 = arith.constant 0 : index
      %c0_6 = arith.constant 0 : index
      %11 = vector.load %arg3[%c0, %c0_5, %c0_6] : memref<2x4x256xf32, #tpu.memory_space<vmem>>, vector<2x4x256xf32>
      %cst = arith.constant dense<0.000000e+00> : vector<4x256xf32>
      %12 = vector.multi_reduction <add>, %11, %cst [0] : vector<2x4x256xf32> to vector<4x256xf32>
      %13 = arith.mulf %11, %11 : vector<2x4x256xf32>
      %cst_7 = arith.constant dense<0.000000e+00> : vector<4x256xf32>
      %14 = vector.multi_reduction <add>, %13, %cst_7 [0] : vector<2x4x256xf32> to vector<4x256xf32>
      %c0_8 = arith.constant 0 : index
      %c0_9 = arith.constant 0 : index
      %15 = vector.load %arg7[%c0_8, %c0_9] : memref<4x1xf32, #tpu.memory_space<vmem>>, vector<4x1xf32>
      %cst_10 = arith.constant dense<0.000000e+00> : vector<4xf32>
      %16 = vector.multi_reduction <add>, %12, %cst_10 [1] : vector<4x256xf32> to vector<4xf32>
      %17 = vector.shape_cast %16 : vector<4xf32> to vector<4x1xf32>
      %18 = arith.addf %15, %17 : vector<4x1xf32>
      %c0_11 = arith.constant 0 : index
      %c0_12 = arith.constant 0 : index
      %19 = vector.load %arg7[%c0_11, %c0_12] : memref<4x1xf32, #tpu.memory_space<vmem>>, vector<4x1xf32>
      tpu.vector_store %arg7[%c0_11, %c0_12], %18 {strides = array<i32>} : memref<4x1xf32, #tpu.memory_space<vmem>>, vector<4x1xf32>,
      %c0_13 = arith.constant 0 : index
      %c0_14 = arith.constant 0 : index
      %20 = vector.load %arg8[%c0_13, %c0_14] : memref<4x1xf32, #tpu.memory_space<vmem>>, vector<4x1xf32>
      %cst_15 = arith.constant dense<0.000000e+00> : vector<4xf32>
      %21 = vector.multi_reduction <add>, %14, %cst_15 [1] : vector<4x256xf32> to vector<4xf32>
      %22 = vector.shape_cast %21 : vector<4xf32> to vector<4x1xf32>
      %23 = arith.addf %20, %22 : vector<4x1xf32>
      %c0_16 = arith.constant 0 : index
      %c0_17 = arith.constant 0 : index
      %24 = vector.load %arg8[%c0_16, %c0_17] : memref<4x1xf32, #tpu.memory_space<vmem>>, vector<4x1xf32>
      tpu.vector_store %arg8[%c0_16, %c0_17], %23 {strides = array<i32>} : memref<4x1xf32, #tpu.memory_space<vmem>>, vector<4x1xf32>,
      %c0_i32_18 = arith.constant 0 : i32
      %25 = arith.cmpi eq, %arg2, %c0_i32_18 : i32
      %26 = arith.extui %25 : i1 to i32
      %c0_i32_19 = arith.constant 0 : i32
      %27 = arith.cmpi ne, %26, %c0_i32_19 : i32
      scf.if %27 {
        %c0_20 = arith.constant 0 : index
        %c0_21 = arith.constant 0 : index
        %28 = vector.load %arg7[%c0_20, %c0_21] : memref<4x1xf32, #tpu.memory_space<vmem>>, vector<4x1xf32>
        %cst_22 = arith.constant 0.001953125 : f32
        %29 = vector.broadcast %cst_22 : f32 to vector<4x1xf32>
        %30 = arith.mulf %28, %29 : vector<4x1xf32>
        %c0_23 = arith.constant 0 : index
        %c0_24 = arith.constant 0 : index
        %31 = vector.load %arg8[%c0_23, %c0_24] : memref<4x1xf32, #tpu.memory_space<vmem>>, vector<4x1xf32>
        %cst_25 = arith.constant 0.001953125 : f32
        %32 = vector.broadcast %cst_25 : f32 to vector<4x1xf32>
        %33 = arith.mulf %31, %32 : vector<4x1xf32>
        %34 = arith.mulf %30, %30 : vector<4x1xf32>
        %35 = arith.subf %33, %34 : vector<4x1xf32>
        %cst_26 = arith.constant 0.000000e+00 : f32
        %36 = vector.broadcast %cst_26 : f32 to vector<4x1xf32>
        %37 = arith.maximumf %35, %36 : vector<4x1xf32>
        %cst_27 = arith.constant 9.99999974E-6 : f32
        %38 = vector.broadcast %cst_27 : f32 to vector<4x1xf32>
        %39 = arith.addf %37, %38 : vector<4x1xf32>
        %40 = math.rsqrt %39 : vector<4x1xf32>
        %c0_28 = arith.constant 0 : index
        %c0_29 = arith.constant 0 : index
        %41 = vector.load %arg4[%c0_28, %c0_29] : memref<4x1xf32, #tpu.memory_space<vmem>>, vector<4x1xf32>
        %42 = arith.mulf %41, %40 : vector<4x1xf32>
        %c0_30 = arith.constant 0 : index
        %c0_31 = arith.constant 0 : index
        %43 = vector.load %arg9[%c0_30, %c0_31] : memref<4x1xf32, #tpu.memory_space<vmem>>, vector<4x1xf32>
        tpu.vector_store %arg9[%c0_30, %c0_31], %42 {strides = array<i32>} : memref<4x1xf32, #tpu.memory_space<vmem>>, vector<4x1xf32>,
        %c0_32 = arith.constant 0 : index
        %c0_33 = arith.constant 0 : index
        %44 = vector.load %arg5[%c0_32, %c0_33] : memref<4x1xf32, #tpu.memory_space<vmem>>, vector<4x1xf32>
        %45 = arith.mulf %30, %42 : vector<4x1xf32>
        %46 = arith.subf %44, %45 : vector<4x1xf32>
        %c0_34 = arith.constant 0 : index
        %c0_35 = arith.constant 0 : index
        %47 = vector.load %arg10[%c0_34, %c0_35] : memref<4x1xf32, #tpu.memory_space<vmem>>, vector<4x1xf32>
        tpu.vector_store %arg10[%c0_34, %c0_35], %46 {strides = array<i32>} : memref<4x1xf32, #tpu.memory_space<vmem>>, vector<4x1xf32>,
      } else {
      }
    } else {
    }
    %c1_i32 = arith.constant 1 : i32
    %8 = arith.cmpi eq, %arg1, %c1_i32 : i32
    %9 = arith.extui %8 : i1 to i32
    %c0_i32_4 = arith.constant 0 : i32
    %10 = arith.cmpi ne, %9, %c0_i32_4 : i32
    scf.if %10 {
      %c0 = arith.constant 0 : index
      %c0_5 = arith.constant 0 : index
      %c0_6 = arith.constant 0 : index
      %11 = vector.load %arg3[%c0, %c0_5, %c0_6] : memref<2x4x256xf32, #tpu.memory_space<vmem>>, vector<2x4x256xf32>
      %c0_7 = arith.constant 0 : index
      %c0_8 = arith.constant 0 : index
      %12 = vector.load %arg9[%c0_7, %c0_8] : memref<4x1xf32, #tpu.memory_space<vmem>>, vector<4x1xf32>
      %13 = vector.shape_cast %12 : vector<4x1xf32> to vector<1x4x1xf32>
      %14 = vector.broadcast %13 : vector<1x4x1xf32> to vector<2x4x256xf32>
      %15 = arith.mulf %11, %14 : vector<2x4x256xf32>
      %c0_9 = arith.constant 0 : index
      %c0_10 = arith.constant 0 : index
      %16 = vector.load %arg10[%c0_9, %c0_10] : memref<4x1xf32, #tpu.memory_space<vmem>>, vector<4x1xf32>
      %17 = vector.shape_cast %16 : vector<4x1xf32> to vector<1x4x1xf32>
      %18 = vector.broadcast %17 : vector<1x4x1xf32> to vector<2x4x256xf32>
      %19 = arith.addf %15, %18 : vector<2x4x256xf32>
      %c0_11 = arith.constant 0 : index
      %c0_12 = arith.constant 0 : index
      %c0_13 = arith.constant 0 : index
      %20 = vector.load %arg6[%c0_11, %c0_12, %c0_13] : memref<2x4x256xf32, #tpu.memory_space<vmem>>, vector<2x4x256xf32>
      tpu.vector_store %arg6[%c0_11, %c0_12, %c0_13], %19 {strides = array<i32>} : memref<2x4x256xf32, #tpu.memory_space<vmem>>, vector<2x4x256xf32>,
    } else {
    }
    return
  }
  func.func @transform_0(%arg0: i32, %arg1: i32, %arg2: i32) -> (i32, i32, i32) {
    %c0_i32 = arith.constant 0 : i32
    %c0_i32_0 = arith.constant 0 : i32
    return %c0_i32, %arg0, %arg2 : i32, i32, i32
  }
  func.func @transform_1(%arg0: i32, %arg1: i32, %arg2: i32) -> (i32, i32) {
    %c0_i32 = arith.constant 0 : i32
    %c0_i32_0 = arith.constant 0 : i32
    return %arg0, %c0_i32 : i32, i32
  }
  func.func @transform_2(%arg0: i32, %arg1: i32, %arg2: i32) -> (i32, i32) {
    %c0_i32 = arith.constant 0 : i32
    %c0_i32_0 = arith.constant 0 : i32
    return %arg0, %c0_i32 : i32, i32
  }
  func.func @transform_3(%arg0: i32, %arg1: i32, %arg2: i32) -> (i32, i32, i32) {
    %0 = arith.muli %arg2, %arg1 : i32
    %c0_i32 = arith.constant 0 : i32
    %c0_i32_0 = arith.constant 0 : i32
    return %c0_i32, %arg0, %0 : i32, i32, i32
  }
}

</mosaic_0001>

<llo_original>
// kernel: tpu_custom_call.1
$region0: #{tpu_custom_call.1}
  #allocation0 [shape = 'u32[]', space=smem, size = 0x4, offset = 0x4, fixed_abs, tag = 'smem constant byte address 0x4 - core index']
  #allocation1 [shape = 'u32[72,128]{1,0:T(1,128)}', space=vmem, size = 0x9000, scoped, tag = 'internal scratch']
  #allocation2 [shape = 'f32[4,1]{1,0:T(4,128)}', space=vmem, size = 0x800, scoped, tag = 'scratch operand']
  #allocation3 [shape = 'f32[4,1]{1,0:T(4,128)}', space=vmem, size = 0x800, scoped, tag = 'scratch operand']
  #allocation4 [shape = 'f32[4,1]{1,0:T(4,128)}', space=vmem, size = 0x800, scoped, tag = 'scratch operand']
  #allocation5 [shape = 'f32[4,1]{1,0:T(4,128)}', space=vmem, size = 0x800, scoped, tag = 'scratch operand']
  %s0 = inlined_call_operand.hbm [shape: f32[2,4,256], index: 0, kind: input, shape index: {}]
  %s1 = inlined_call_operand.vmem [shape: f32[4,1], index: 1, kind: input, shape index: {}]
  %s2 = inlined_call_operand.vmem [shape: f32[4,1], index: 2, kind: input, shape index: {}]
  %s3 = inlined_call_operand.hbm [shape: f32[2,4,256], index: 3, kind: output, shape index: {}]
  %s4 = sld [smem:[#allocation0]]
  $region65: #{tpu_custom_call.1} parent=0
    _
  %s6 = ssub.s32 1, %s4
  %s7 = scalar_select 0, %s6, %s4
  $region1: #{tpu_custom_call.1} parent=0
    #allocation6 [shape = 'u8[8192]{0}', space=vmem, size = 0x2000, scoped, tag = 'input window, operand 0, single buffered']
    #allocation7 [shape = 's32[2]{0}', space=sflag, size = 0x8, scoped, tag = 'scoped memory for tpu_custom_call.1']
    #allocation8 [shape = 's32[2]{0}', space=sflag, size = 0x8, scoped, tag = 'scoped memory for tpu_custom_call.1']
    #allocation9 [shape = 'u8[16384]{0}', space=vmem, size = 0x4000, scoped, tag = 'output window, operand 0']
    %8 = vsyncpa [#allocation7], 0
    %9 = vsyncpa [#allocation8], 0
    %s10 = scalar_lea.sflag [#allocation8], 1
    %11 = vsyncpa %s10, 0
    loop: start=0, step=1, limit=4
    $region2: #{tpu_custom_call.1} parent=1 // loop_pre_header
      _
    $region3: #{tpu_custom_call.1} parent=1 // loop_header
      %s13 = sphi 0, %s17
      %p14 = scmp.ge.s32.totalorder %s13, 4
      %s20 = sphi 0, %s39
      %s21 = sphi 0, %s35
      %s22 = sphi 0, %s31
      %s23 = sphi 0, %s20
      %s24 = sphi 0, %s21
      %s25 = sphi 0, %s22
      %s26 = sphi 0, %s23
      %s27 = sphi 0, %s24
      %s28 = sphi 0, %s25
      %s44 = sphi 0, %s46
      %s47 = sphi 0, %s44
      %s48 = sphi 0, %s47
      %s64 = sphi 0, %s48
      %s70 = sphi 0, %s72
      %s73 = sphi 0, %s70
      %s74 = sphi 0, %s73
      %s90 = sphi 0, %s74
      %s96 = sphi 0, %s98
      %s99 = sphi 0, %s96
      %s100 = sphi 0, %s99
      %s116 = sphi 0, %s100
      %s126 = sphi 0, %s128
      %s129 = sphi 0, %s126
      %s130 = sphi 0, %s129
      %s146 = sphi 0, %s130
    $region4: #{tpu_custom_call.1} parent=1 // loop_header_branch
      %16 = sbr.rel (%p14) target = $region8
    $region5: #{tpu_custom_call.1} parent=1 // loop_body
      %s18 = ssub.s32 %s13, 1
      %s19 = ssub.s32 %s13, 2
      %s29 = sadd.s32 1, %s22
      %p30 = scmp.ge.s32.totalorder %s29, 1
      %s31 = scalar_select %p30, 0, %s29
      %s32 = sadd.s32 1, %s21
      %s33 = scalar_select %p30, %s32, %s21
      %p34 = scmp.ge.s32.totalorder %s33, 2
      %s35 = scalar_select %p34, 0, %s33
      %s36 = sadd.s32 1, %s20
      %s37 = scalar_select %p34, %s36, %s20
      %p38 = scmp.ge.s32.totalorder %s37, 1
      %s39 = scalar_select %p38, 0, %s37
      %s40 = ssub.s32 %s20, %s39
      %s41 = ssub.s32 %s22, %s31
      %s42 = sor.u32 %s40, %s41
      %p43 = scmp.eq.s32.totalorder %s42, 0
      %s45 = sadd.s32 %s44, 1
      %s46 = scalar_select %p43, %s44, %s45
      %p49 = pneg %p43
      %p50 = scmp.eq.s32.totalorder %s13, 1
      %p51 = por %p49, %p50
      %p52 = scmp.ne.s32.totalorder %s44, %s47
      %p53 = scmp.eq.s32.totalorder %s13, 0
      %p54 = por %p52, %p53
      %p55 = scmp.ne.s32.totalorder %s44, %s47
      %p56 = scmp.eq.s32.totalorder %s18, 1
      %p57 = por %p55, %p56
      %p58 = scmp.ne.s32.totalorder %s47, %s48
      %p59 = scmp.eq.s32.totalorder %s18, 0
      %p60 = por %p58, %p59
      %p61 = scmp.ne.s32.totalorder %s47, %s48
      %p62 = scmp.eq.s32.totalorder %s19, 1
      %p63 = por %p61, %p62
      %p65 = scmp.ne.s32.totalorder %s48, %s64
      %p66 = scmp.eq.s32.totalorder %s19, 0
      %p67 = por %p65, %p66
      %s68 = ssub.s32 %s20, %s39
      %p69 = scmp.eq.s32.totalorder %s68, 0
      %s71 = sadd.s32 %s70, 1
      %s72 = scalar_select %p69, %s70, %s71
      %p75 = pneg %p69
      %p76 = scmp.eq.s32.totalorder %s13, 1
      %p77 = por %p75, %p76
      %p78 = scmp.ne.s32.totalorder %s70, %s73
      %p79 = scmp.eq.s32.totalorder %s13, 0
      %p80 = por %p78, %p79
      %p81 = scmp.ne.s32.totalorder %s70, %s73
      %p82 = scmp.eq.s32.totalorder %s18, 1
      %p83 = por %p81, %p82
      %p84 = scmp.ne.s32.totalorder %s73, %s74
      %p85 = scmp.eq.s32.totalorder %s18, 0
      %p86 = por %p84, %p85
      %p87 = scmp.ne.s32.totalorder %s73, %s74
      %p88 = scmp.eq.s32.totalorder %s19, 1
      %p89 = por %p87, %p88
      %p91 = scmp.ne.s32.totalorder %s74, %s90
      %p92 = scmp.eq.s32.totalorder %s19, 0
      %p93 = por %p91, %p92
      %s94 = ssub.s32 %s20, %s39
      %p95 = scmp.eq.s32.totalorder %s94, 0
      %s97 = sadd.s32 %s96, 1
      %s98 = scalar_select %p95, %s96, %s97
      %p101 = pneg %p95
      %p102 = scmp.eq.s32.totalorder %s13, 1
      %p103 = por %p101, %p102
      %p104 = scmp.ne.s32.totalorder %s96, %s99
      %p105 = scmp.eq.s32.totalorder %s13, 0
      %p106 = por %p104, %p105
      %p107 = scmp.ne.s32.totalorder %s96, %s99
      %p108 = scmp.eq.s32.totalorder %s18, 1
      %p109 = por %p107, %p108
      %p110 = scmp.ne.s32.totalorder %s99, %s100
      %p111 = scmp.eq.s32.totalorder %s18, 0
      %p112 = por %p110, %p111
      %p113 = scmp.ne.s32.totalorder %s99, %s100
      %p114 = scmp.eq.s32.totalorder %s19, 1
      %p115 = por %p113, %p114
      %p117 = scmp.ne.s32.totalorder %s100, %s116
      %p118 = scmp.eq.s32.totalorder %s19, 0
      %p119 = por %p117, %p118
      %s120 = smul.u32 %s22, %s21
      %s121 = smul.u32 %s31, %s35
      %s122 = ssub.s32 %s20, %s39
      %s123 = ssub.s32 %s120, %s121
      %s124 = sor.u32 %s122, %s123
      %p125 = scmp.eq.s32.totalorder %s124, 0
      %s127 = sadd.s32 %s126, 1
      %s128 = scalar_select %p125, %s126, %s127
      %p131 = pneg %p125
      %p132 = scmp.eq.s32.totalorder %s13, 1
      %p133 = por %p131, %p132
      %p134 = scmp.ne.s32.totalorder %s126, %s129
      %p135 = scmp.eq.s32.totalorder %s13, 0
      %p136 = por %p134, %p135
      %p137 = scmp.ne.s32.totalorder %s126, %s129
      %p138 = scmp.eq.s32.totalorder %s18, 1
      %p139 = por %p137, %p138
      %p140 = scmp.ne.s32.totalorder %s129, %s130
      %p141 = scmp.eq.s32.totalorder %s18, 0
      %p142 = por %p140, %p141
      %p143 = scmp.ne.s32.totalorder %s129, %s130
      %p144 = scmp.eq.s32.totalorder %s19, 1
      %p145 = por %p143, %p144
      %p147 = scmp.ne.s32.totalorder %s130, %s146
      %p148 = scmp.eq.s32.totalorder %s19, 0
      %p149 = por %p147, %p148
      %p150 = scmp.le.s32.totalorder 1, %s13
      %p151 = scmp.lt.s32.totalorder %s13, 3
      %p152 = pnand %p150, %p151
      %p153 = pneg %p152
      // Predicated region
      $region9: #{tpu_custom_call.1} parent=5 // pred_check
        _
      $region10: #{tpu_custom_call.1} parent=5 // pred_check_branch
        %155 = sbr.rel (%p152) target = $region12
      $region11: #{tpu_custom_call.1} parent=5 // pred_region
        %s156 = ssub.s32 %s13, 1
        // Predicated region
        $region13: #{tpu_custom_call.1} parent=11 // pred_check
          %p157 = pneg %p60
        $region14: #{tpu_custom_call.1} parent=11 // pred_check_branch
          %159 = sbr.rel (%p157) target = $region16
        $region15: #{tpu_custom_call.1} parent=11 // pred_region
          %s160 = smul.u32 2, %s25
          %162 = vsyncadd [#allocation7], 0
          %s163 = smul.addr %s23, 2
          %s164 = sadd.s32 %s160, %s163
          %s165 = smul.addr %s164, 4
          %s166 = scalar_lea.hbm %s0, %s165
          %s167 = sshll.u32 %s166, 4
          %s168 = int_to_ptr.hbm [resolvable:$true] %s167
          %s169 = sshll.u32 [#allocation6], 4
          %s170 = int_to_ptr.vmem [resolvable:$true] %s169
          %175 = dma.hbm_to_vmem [thread:$0]  %s168, 256, %s170, [#allocation7], 128, 128, 8
        $region16: #{tpu_custom_call.1} parent=11 // pred_fallthru
          _
        // Predicated region
        $region17: #{tpu_custom_call.1} parent=11 // pred_check
          %p176 = pneg %p86
        $region18: #{tpu_custom_call.1} parent=11 // pred_check_branch
          %178 = sbr.rel (%p176) target = $region20
        $region19: #{tpu_custom_call.1} parent=11 // pred_region
          %p179 = scmp.lt.s32.totalorder %s23, 0
          %s180 = scalar_select %p179, %s23, 0
          %s181 = smul.addr %s180, 4
          %s182 = scalar_lea.vmem %s1, %s181
        $region20: #{tpu_custom_call.1} parent=11 // pred_fallthru
          _
        // Predicated region
        $region21: #{tpu_custom_call.1} parent=11 // pred_check
          %p183 = pneg %p112
        $region22: #{tpu_custom_call.1} parent=11 // pred_check_branch
          %185 = sbr.rel (%p183) target = $region24
        $region23: #{tpu_custom_call.1} parent=11 // pred_region
          %p186 = scmp.lt.s32.totalorder %s23, 0
          %s187 = scalar_select %p186, %s23, 0
          %s188 = smul.addr %s187, 4
          %s189 = scalar_lea.vmem %s2, %s188
        $region24: #{tpu_custom_call.1} parent=11 // pred_fallthru
          _
      $region12: #{tpu_custom_call.1} parent=5 // pred_fallthru
        _
      %p190 = scmp.lt.s32.totalorder %s13, 2
      // Predicated region
      $region25: #{tpu_custom_call.1} parent=5 // pred_check
        %p191 = pneg %p190
      $region26: #{tpu_custom_call.1} parent=5 // pred_check_branch
        %193 = sbr.rel (%p191) target = $region28
      $region27: #{tpu_custom_call.1} parent=5 // pred_region
        _
      $region28: #{tpu_custom_call.1} parent=5 // pred_fallthru
        _
      %p194 = scmp.le.s32.totalorder 1, %s13
      %p195 = scmp.lt.s32.totalorder %s13, 3
      %p196 = pnand %p194, %p195
      %p197 = pneg %p196
      // Predicated region
      $region29: #{tpu_custom_call.1} parent=5 // pred_check
        _
      $region30: #{tpu_custom_call.1} parent=5 // pred_check_branch
        %199 = sbr.rel (%p196) target = $region32
      $region31: #{tpu_custom_call.1} parent=5 // pred_region
        %s200 = ssub.s32 %s13, 1
        // Predicated region
        $region33: #{tpu_custom_call.1} parent=31 // pred_check
          %p201 = pneg %p60
        $region34: #{tpu_custom_call.1} parent=31 // pred_check_branch
          %203 = sbr.rel (%p201) target = $region36
        $region35: #{tpu_custom_call.1} parent=31 // pred_region
          %205 = dma.done [#allocation7], 256
        $region36: #{tpu_custom_call.1} parent=31 // pred_fallthru
          _
        %p206 = pneg %p60
        %p207 = pneg %p57
        %p208 = scmp.lt.s32.totalorder %s23, 0
        %s209 = scalar_select %p208, %s23, 0
        %s210 = smul.addr %s209, 4
        %s211 = scalar_lea.vmem %s1, %s210
        %p212 = pneg %p86
        %p213 = pneg %p83
        %p214 = scmp.lt.s32.totalorder %s23, 0
        %s215 = scalar_select %p214, %s23, 0
        %s216 = smul.addr %s215, 4
        %s217 = scalar_lea.vmem %s2, %s216
        %p218 = pneg %p112
        %p219 = pneg %p109
        %p220 = pneg %p142
        %p221 = pneg %p139
        %s222 = sand.u32 %s129, 1
        %s223 = scalar_lea.sflag [#allocation8], %s222
        %s224 = sand.u32 %s129, 1
        %s225 = smul.addr %s224, 16
        %s226 = scalar_lea.vmem [#allocation9], %s225
        %s227 = smul.u32 2, %s25
        %p228 = scmp.lt.s32.totalorder %s23, 0
        %s229 = scalar_select %p228, %s23, 0
        %s230 = smul.addr %s229, 4
        %s231 = scalar_lea.vmem %s1, %s230
        %p232 = scmp.lt.s32.totalorder %s23, 0
        %s233 = scalar_select %p232, %s23, 0
        %s234 = smul.addr %s233, 4
        %s235 = scalar_lea.vmem %s2, %s234
        %s236 = smul.u32 %s25, %s24
        %s237 = smul.u32 2, %s236
        %p238 = scmp.eq.s32.totalorder %s24, 0
        %p239 = scmp.eq.s32.totalorder %s25, 0
        %p240 = pnand %p238, %p239
        %p241 = pneg %p240
        // Predicated region
        $region37: #{tpu_custom_call.1} parent=31 // pred_check
          _
        $region38: #{tpu_custom_call.1} parent=31 // pred_check_branch
          %243 = sbr.rel (%p240) target = $region40
        $region39: #{tpu_custom_call.1} parent=31 // pred_region
          %vm244 = vcmask 3072
          %245 = vst.msk [vmem:[#allocation2] sm:$0xf] %vm244, 0.0
          %246 = vst.msk [vmem:[#allocation3] sm:$0xf] %vm244, 0.0
        $region40: #{tpu_custom_call.1} parent=31 // pred_fallthru
          _
        // Predicated region
        $region41: #{tpu_custom_call.1} parent=31 // pred_check
          %p247 = pneg %p238
        $region42: #{tpu_custom_call.1} parent=31 // pred_check_branch
          %249 = sbr.rel (%p247) target = $region44
        $region43: #{tpu_custom_call.1} parent=31 // pred_region
          %v250 = vld [vmem:[#allocation6] sm:$0xff]
          %v251 = vld [vmem:[#allocation6 + $0x8] sm:$0xff]
          %254 = vst [vmem:[#allocation1] ss:$2 sm:$0xff] %v250
          %v255 = vld.sshfl [vmem:[#allocation1] sm:$0xff pattern:$0x75316420]
          %v256 = vld.sshfl [vmem:[#allocation1 + $0x8] sm:$0xff pattern:$0x75316420]
          %s257 = scalar_lea.vmem [#allocation1], 16
          %258 = vst [vmem:[%s257] ss:$2 sm:$0xff] %v251
          %v259 = vld.sshfl [vmem:[#allocation1 + $0x10] sm:$0xff pattern:$0x75316420]
          %v260 = vld.sshfl [vmem:[#allocation1 + $0x18] sm:$0xff pattern:$0x75316420]
          %vm265 = vcmask 1043456
          %v266 = vsel %vm265, %v255, 0.0
          %v267 = vsel %vm265, %v259, 0.0
          %v268 = vadd.f32 %v266, %v267
          %v269 = vsel %vm265, %v256, 0.0
          %v270 = vsel %vm265, %v260, 0.0
          %v271 = vadd.f32 %v269, %v270
          %v272 = vmul.f32 %v250, %v250
          %v273 = vmul.f32 %v251, %v251
          %276 = vst [vmem:[#allocation1] ss:$2 sm:$0xff] %v272
          %v277 = vld.sshfl [vmem:[#allocation1] sm:$0xff pattern:$0x75316420]
          %v278 = vld.sshfl [vmem:[#allocation1 + $0x8] sm:$0xff pattern:$0x75316420]
          %s279 = scalar_lea.vmem [#allocation1], 16
          %280 = vst [vmem:[%s279] ss:$2 sm:$0xff] %v273
          %v281 = vld.sshfl [vmem:[#allocation1 + $0x10] sm:$0xff pattern:$0x75316420]
          %v282 = vld.sshfl [vmem:[#allocation1 + $0x18] sm:$0xff pattern:$0x75316420]
          %v287 = vsel %vm265, %v277, 0.0
          %v288 = vsel %vm265, %v281, 0.0
          %v289 = vadd.f32 %v287, %v288
          %v290 = vsel %vm265, %v278, 0.0
          %v291 = vsel %vm265, %v282, 0.0
          %v292 = vadd.f32 %v290, %v291
          %v293 = vld [vmem:[#allocation2] sm:$0xf]
          %v294 = vsel %vm265, %v268, 0.0
          %v295 = vsel %vm265, %v271, 0.0
          %v296 = vadd.f32 %v294, %v295
          %297 = vadd.xlane.f32.xlu0 %v296
          %v298 = vpop.xlane.xlu0 %297
          %v299 = vadd.f32 %v293, %v298
          %vm300 = vcmask 3072
          %301 = vst.msk [vmem:[#allocation2] sm:$0xf] %vm300, %v299
          %v302 = vld [vmem:[#allocation3] sm:$0xf]
          %v303 = vsel %vm265, %v289, 0.0
          %v304 = vsel %vm265, %v292, 0.0
          %v305 = vadd.f32 %v303, %v304
          %306 = vadd.xlane.f32.xlu0 %v305
          %v307 = vpop.xlane.xlu0 %306
          %v308 = vadd.f32 %v302, %v307
          %309 = vst.msk [vmem:[#allocation3] sm:$0xf] %vm300, %v308
          // Predicated region
          $region45: #{tpu_custom_call.1} parent=43 // pred_check
            %p310 = pneg %p239
          $region46: #{tpu_custom_call.1} parent=43 // pred_check_branch
            %312 = sbr.rel (%p310) target = $region48
          $region47: #{tpu_custom_call.1} parent=43 // pred_region
            %v313 = vld [vmem:[#allocation2] sm:$0xf]
            %v314 = vmul.f32 %v313, 0.001953125
            %v315 = vld [vmem:[#allocation3] sm:$0xf]
            %v316 = vmul.f32 %v315, 0.001953125
            %v317 = vmul.f32 %v314, %v314
            %v318 = vsub.f32 %v316, %v317
            %v319 = vmax.f32 %v318, 0.0
            %v320 = vadd.f32 %v319, 1e-05
            %v321 = vrsqrt.pop %v320
            %v322 = vmul.f32 %v321, %v320
            %v323 = vmul.f32 %v322, %v321
            %v324 = vmul.f32 0.5, %v323
            %v325 = vsub.f32 1.5, %v324
            %v326 = vmul.f32 %v321, %v325
            %vm327 = vweird.f32 %v320
            %vm328 = vweird.f32 %v321
            %vm329 = vmor %vm327, %vm328
            %v330 = vsel %vm329, %v321, %v326
            %v331 = vld [vmem:[%s231] sm:$0xf]
            %v332 = vmul.f32 %v331, %v330
            %333 = vst.msk [vmem:[#allocation4] sm:$0xf] %vm300, %v332
            %v334 = vld [vmem:[%s235] sm:$0xf]
            %v335 = vmul.f32 %v314, %v332
            %v336 = vsub.f32 %v334, %v335
            %337 = vst.msk [vmem:[#allocation5] sm:$0xf] %vm300, %v336
          $region48: #{tpu_custom_call.1} parent=43 // pred_fallthru
            _
        $region44: #{tpu_custom_call.1} parent=31 // pred_fallthru
          _
        %p338 = scmp.eq.s32.totalorder %s24, 1
        // Predicated region
        $region49: #{tpu_custom_call.1} parent=31 // pred_check
          %p339 = pneg %p338
        $region50: #{tpu_custom_call.1} parent=31 // pred_check_branch
          %341 = sbr.rel (%p339) target = $region52
        $region51: #{tpu_custom_call.1} parent=31 // pred_region
          %v342 = vld [vmem:[#allocation6] sm:$0xff]
          %v343 = vld [vmem:[#allocation6 + $0x8] sm:$0xff]
          %v344 = vld [vmem:[#allocation4] sm:$0xf]
          %346 = vset.pattern.permute.xlu0 0
          %347 = vperm.xlu0 %346, %v344
          %v348 = vpop.permute.xlu0 %347
          %v350 = vunpack.c.l.s4 839922192
          %v351 = vunpack.c.0.s8 %v350
          %v352 = vperm.slane %v348, %v351
          %v354 = vmul.f32 %v342, %v352
          %v355 = vmul.f32 %v343, %v352
          %v356 = vld [vmem:[#allocation5] sm:$0xf]
          %358 = vset.pattern.permute.xlu0 0
          %359 = vperm.xlu0 %358, %v356
          %v360 = vpop.permute.xlu0 %359
          %v362 = vunpack.c.l.s4 839922192
          %v363 = vunpack.c.0.s8 %v362
          %v364 = vperm.slane %v360, %v363
          %v366 = vadd.f32 %v354, %v364
          %v367 = vadd.f32 %v355, %v364
          %368 = vst [vmem:[%s226] sm:$0xff] %v366
          %369 = vst [vmem:[%s226 + $0x8] sm:$0xff] %v367
        $region52: #{tpu_custom_call.1} parent=31 // pred_fallthru
          _
        %s370 = sand.u32 %s129, 1
        %s371 = scalar_lea.sflag [#allocation8], %s370
        %s372 = sand.u32 %s129, 1
        %s373 = smul.addr %s372, 16
        %s374 = scalar_lea.vmem [#allocation9], %s373
        // Predicated region
        $region53: #{tpu_custom_call.1} parent=31 // pred_check
          %p375 = pneg %p139
        $region54: #{tpu_custom_call.1} parent=31 // pred_check_branch
          %377 = sbr.rel (%p375) target = $region56
        $region55: #{tpu_custom_call.1} parent=31 // pred_region
          %s378 = smul.u32 %s25, %s24
          %s379 = smul.u32 2, %s378
          %381 = vsyncadd %s371, 0
          %s382 = smul.addr %s23, 2
          %s383 = sadd.s32 %s379, %s382
          %s384 = smul.addr %s383, 4
          %s385 = scalar_lea.hbm %s3, %s384
          %s386 = sshll.u32 %s374, 4
          %s387 = int_to_ptr.vmem [resolvable:$true] %s386
          %s388 = sshll.u32 %s385, 4
          %s389 = int_to_ptr.hbm [resolvable:$true] %s388
          %394 = dma.vmem_to_hbm [thread:$0]  %s387, 256, %s389, %s371, 128, 128, 8
        $region56: #{tpu_custom_call.1} parent=31 // pred_fallthru
          _
      $region32: #{tpu_custom_call.1} parent=5 // pred_fallthru
        _
      %p395 = scmp.le.s32.totalorder 2, %s13
      // Predicated region
      $region57: #{tpu_custom_call.1} parent=5 // pred_check
        %p396 = pneg %p395
      $region58: #{tpu_custom_call.1} parent=5 // pred_check_branch
        %398 = sbr.rel (%p396) target = $region60
      $region59: #{tpu_custom_call.1} parent=5 // pred_region
        %s399 = ssub.s32 %s13, 2
        // Predicated region
        $region61: #{tpu_custom_call.1} parent=59 // pred_check
          %p400 = pneg %p145
        $region62: #{tpu_custom_call.1} parent=59 // pred_check_branch
          %402 = sbr.rel (%p400) target = $region64
        $region63: #{tpu_custom_call.1} parent=59 // pred_region
          %s403 = sand.u32 %s130, 1
          %s404 = scalar_lea.sflag [#allocation8], %s403
          %s405 = sand.u32 %s130, 1
          %s406 = smul.addr %s405, 16
          %s407 = scalar_lea.vmem [#allocation9], %s406
          %409 = dma.done %s404, 256
        $region64: #{tpu_custom_call.1} parent=59 // pred_fallthru
          _
      $region60: #{tpu_custom_call.1} parent=5 // pred_fallthru
        _
    $region6: #{tpu_custom_call.1} parent=1 // loop_footer
      %s17 = sadd.s32 1, %s13
    $region7: #{tpu_custom_call.1} parent=1 // loop_footer_branch
      %12 = sbr.rel target = $region3
    $region8: #{tpu_custom_call.1} parent=1 // loop_exit
      _
    %410 = vsyncpa [#allocation7], 1
    %s411 = scalar_lea.sflag [#allocation7], 1
    %412 = vsyncpa %s411, 1
    %413 = vsyncpa [#allocation8], 1
    %s414 = scalar_lea.sflag [#allocation8], 1
    %415 = vsyncpa %s414, 1

</llo_original>
